<compile_context>
chip_gen: v7x
topology: tpu7x:2x2x1
jax: 0.10.0
libtpu: 0.0.40
codegen_flags: <defaults>
</compile_context>

<pallas_src>
import functools

import jax
import jax.numpy as jnp
from jax import lax
from jax.experimental import pallas as pl
from jax.experimental.pallas import tpu as pltpu


def _round_up(x, m):
    return (x + m - 1) // m * m


# ----------------------------------------------------------------------------
# Tiled matmul + bias kernel:  [M, K] @ [K, N] + [1, N]
# (used for the hoisted GRU input projection and the final linear head)
# ----------------------------------------------------------------------------
def _matmul_bias_kernel(x_ref, w_ref, b_ref, o_ref):
    o_ref[...] = (jnp.dot(x_ref[...], w_ref[...],
                          preferred_element_type=jnp.float32)
                  + b_ref[...]).astype(o_ref.dtype)


def matmul_bias(x2d, w, b2d, *, out_dtype=jnp.float32, tm=256):
    M, K = x2d.shape
    N = w.shape[1]
    tm_eff = min(tm, _round_up(M, 8))
    Mp = _round_up(M, tm_eff)
    if Mp != M:
        x2d = jnp.pad(x2d, ((0, Mp - M), (0, 0)))
    out = pl.pallas_call(
        _matmul_bias_kernel,
        out_shape=jax.ShapeDtypeStruct((Mp, N), out_dtype),
        grid_spec=pltpu.PrefetchScalarGridSpec(
            num_scalar_prefetch=0,
            grid=(Mp // tm_eff,),
            in_specs=[
                pl.BlockSpec((tm_eff, K), lambda i: (i, 0)),
                pl.BlockSpec((K, N), lambda i: (0, 0)),
                pl.BlockSpec((1, N), lambda i: (0, 0)),
            ],
            out_specs=pl.BlockSpec((tm_eff, N), lambda i: (i, 0)),
        ),
        compiler_params=pltpu.CompilerParams(
            dimension_semantics=("parallel",),
            vmem_limit_bytes=48 * 1024 * 1024),
    )(x2d, w, b2d)
    return out[:M] if Mp != M else out


# ----------------------------------------------------------------------------
# Fused bidirectional GRU recurrence kernel.
#   grid = (direction, time_block); gx (= x @ W_ih + b_ih) is precomputed.
#   Hidden state lives in a VMEM scratch, reset at the first time block of
#   each direction.  Pack/pad semantics: h frozen and output zeroed for
#   t >= length (forward), and for the backward pass the reversed time order
#   + the same mask reproduces packed-sequence reverse semantics exactly.
# ----------------------------------------------------------------------------
def _bigru_kernel(gx_ref, whh_ref, bhh_ref, len_ref, out_ref, h_ref,
                  *, hidden, t_blk):
    d = pl.program_id(0)                 # 0 = forward, 1 = backward
    tb = pl.program_id(1)                # time-block index (iteration order)
    nblk = pl.num_programs(1)

    @pl.when(tb == 0)
    def _():
        h_ref[...] = jnp.zeros_like(h_ref)     # pack_padded => h0 = 0

    H = hidden
    whh = whh_ref[...]                   # [H, 3H]  bf16
    bhh = bhh_ref[...]                   # [1, 3H]  f32
    lengths = len_ref[...]               # [B, 1]   int32

    # global time index of the first row of the DMA'd block
    blk_start = (tb + d * (nblk - 1 - 2 * tb)) * t_blk

    def step(i, h):
        # local index within the block, in iteration order
        li = i + d * (t_blk - 1 - 2 * i)          # fwd: i, bwd: t_blk-1-i
        t = blk_start + li                        # global timestep
        gx_t = gx_ref[li]                         # [B, 3H] f32 (has b_ih)
        gh = jnp.dot(h.astype(jnp.bfloat16), whh,
                     preferred_element_type=jnp.float32) + bhh
        r = jax.nn.sigmoid(gx_t[:, :H] + gh[:, :H])
        z = jax.nn.sigmoid(gx_t[:, H:2 * H] + gh[:, H:2 * H])
        n = jnp.tanh(gx_t[:, 2 * H:] + r * gh[:, 2 * H:])
        h_new = (1.0 - z) * n + z * h
        valid = t < lengths                       # [B, 1] bool
        out_ref[li] = jnp.where(valid, h_new, 0.0).astype(out_ref.dtype)
        return jnp.where(valid, h_new, h)         # freeze state past length

    h_ref[...] = lax.fori_loop(0, t_blk, step, h_ref[...], unroll=True)


def bigru_layer(gx, whh_stack, bhh_stack, lengths_2d, *, hidden, t_blk):
    """gx: [S, B, 6H] f32 (fwd gates | bwd gates).  Returns [S, B, 2H] bf16."""
    S, B, _ = gx.shape
    H = hidden
    nblk = S // t_blk

    def tmap(d, tb):                     # forward order for d=0, reversed for d=1
        return tb + d * (nblk - 1 - 2 * tb)

    return pl.pallas_call(
        functools.partial(_bigru_kernel, hidden=H, t_blk=t_blk),
        out_shape=jax.ShapeDtypeStruct((S, B, 2 * H), jnp.bfloat16),
        grid_spec=pltpu.PrefetchScalarGridSpec(
            num_scalar_prefetch=0,
            grid=(2, nblk),
            in_specs=[
                pl.BlockSpec((t_blk, B, 3 * H),
                             lambda d, tb: (tmap(d, tb), 0, d)),
                pl.BlockSpec((pl.Squeezed(), H, 3 * H),
                             lambda d, tb: (d, 0, 0)),
                pl.BlockSpec((pl.Squeezed(), 1, 3 * H),
                             lambda d, tb: (d, 0, 0)),
                pl.BlockSpec((B, 1), lambda d, tb: (0, 0)),
            ],
            out_specs=pl.BlockSpec((t_blk, B, H),
                                   lambda d, tb: (tmap(d, tb), 0, d)),
            scratch_shapes=[pltpu.VMEM((B, H), jnp.float32)],
        ),
        compiler_params=pltpu.CompilerParams(
            dimension_semantics=("parallel", "arbitrary"),
            vmem_limit_bytes=48 * 1024 * 1024),
    )(gx, whh_stack, bhh_stack, lengths_2d)


# ----------------------------------------------------------------------------
# BertRNN forward (GRU stack + linear head)
# ----------------------------------------------------------------------------
def bert_rnn_forward(hidden_states, attention_mask, params, *, n_hl, units,
                     num_labels, t_blk=8):
    """hidden_states: [B, S, input_size] (= BERT last_hidden_state).
       attention_mask: [B, S] in {0,1}.  Returns logits [B, S, num_labels]."""
    B0, S0, _ = hidden_states.shape
    lengths = jnp.sum(attention_mask, axis=1).astype(jnp.int32)       # [B0]

    # pad batch to a sublane multiple and seq to a time-block multiple
    B = _round_up(B0, 8)
    S = _round_up(S0, t_blk)
    x = jnp.pad(hidden_states.astype(jnp.bfloat16),
                ((0, B - B0), (0, S - S0), (0, 0)))
    lengths_2d = jnp.pad(lengths, (0, B - B0)).reshape(B, 1)          # pads -> 0

    # single layout change: batch-major -> time-major for the whole stack
    x = jnp.transpose(x, (1, 0, 2))                                   # [S, B, D]

    H = units
    for layer in range(n_hl):
        lp = params["gru"][layer]
        din = x.shape[-1]
        # hoisted input projection for BOTH directions: one big MXU matmul
        gx = matmul_bias(x.reshape(S * B, din), lp["wih"], lp["bih"],
                         out_dtype=jnp.float32)                       # [S*B, 6H]
        gx = gx.reshape(S, B, 6 * H)
        # fused fwd+bwd recurrence; output already the [fwd | bwd] concat
        x = bigru_layer(gx, lp["whh"], lp["bhh"], lengths_2d,
                        hidden=H, t_blk=t_blk)                        # [S, B, 2H]
        # TODO(synk): inter-layer dropout (p=0.1) is training-only in torch.nn.GRU;
        # eval-mode semantics used here (no dropout).

    # pad_packed_sequence pads to max(lengths); example mask guarantees max == S0.
    w_lin, b_lin = params["linear"]                                   # N padded to 128
    logits = matmul_bias(x.reshape(S * B, 2 * H), w_lin, b_lin,
                         out_dtype=jnp.float32)                       # [S*B, 128]
    logits = logits.reshape(S, B, -1)[:, :, :num_labels]
    logits = jnp.transpose(logits, (1, 0, 2))[:B0, :S0]               # [B, S, L]
    return logits


# ----------------------------------------------------------------------------
# Deterministic parameter init (matches nn.GRU / nn.Linear shapes), repacked
# into the kernel layout: [W_ih_f.T | W_ih_b.T] (bf16), stacked W_hh.T (bf16).
# ----------------------------------------------------------------------------
def init_params(key, *, input_size, units, n_hl, num_labels, label_pad=128):
    params = {"gru": [], "linear": None}
    k_gru = 1.0 / jnp.sqrt(jnp.float32(units))

    def uni(k, shape, scale):
        return jax.random.uniform(k, shape, jnp.float32, -scale, scale)

    for layer in range(n_hl):
        din = input_size if layer == 0 else 2 * units
        wih, bih, whh, bhh = [], [], [], []
        for _ in range(2):                                     # fwd, bwd
            key, k1, k2, k3, k4 = jax.random.split(key, 5)
            w_ih = uni(k1, (3 * units, din), k_gru)            # torch: weight_ih
            w_hh = uni(k2, (3 * units, units), k_gru)          # torch: weight_hh
            b_ih = uni(k3, (3 * units,), k_gru)
            b_hh = uni(k4, (3 * units,), k_gru)
            wih.append(w_ih.T)
            bih.append(b_ih)
            whh.append(w_hh.T)
            bhh.append(b_hh)
        params["gru"].append({
            "wih": jnp.concatenate(wih, axis=1).astype(jnp.bfloat16),   # [din, 6H]
            "bih": jnp.concatenate(bih).reshape(1, 6 * units),          # [1, 6H] f32
            "whh": jnp.stack(whh).astype(jnp.bfloat16),                 # [2, H, 3H]
            "bhh": jnp.stack(bhh).reshape(2, 1, 3 * units),             # [2, 1, 3H]
        })

    key, k1, k2 = jax.random.split(key, 3)
    k_lin = 1.0 / jnp.sqrt(jnp.float32(2 * units))
    w_lin = uni(k1, (num_labels, 2 * units), k_lin)            # torch: Linear.weight
    b_lin = uni(k2, (num_labels,), k_lin)
    n_pad = _round_up(max(num_labels, label_pad), 128)
    w_pad = jnp.zeros((2 * units, n_pad), jnp.float32).at[:, :num_labels].set(w_lin.T)
    b_pad = jnp.zeros((1, n_pad), jnp.float32).at[0, :num_labels].set(b_lin)
    params["linear"] = (w_pad.astype(jnp.bfloat16), b_pad)
    return params


if __name__ == "__main__":
    B, S = 2, 8
    INPUT_SIZE = 256     # stands in for 768
    UNITS = 128          # stands in for 512 (kept a multiple of 128 for lanes)
    N_HL = 2             # stands in for 6
    NUM_LABELS = 5

    root = jax.random.PRNGKey(0)
    k_hs, k_p = jax.random.split(root)

    # stand-in for BertModel(...).last_hidden_state
    hidden_states = jax.random.normal(k_hs, (B, S, INPUT_SIZE), jnp.float32)
    # attention mask: seq 0 full length S, seq 1 length 5 (max == S)
    attention_mask = jnp.array(
        [[1] * S, [1] * 5 + [0] * (S - 5)], dtype=jnp.int32)

    params = init_params(k_p, input_size=INPUT_SIZE, units=UNITS,
                         n_hl=N_HL, num_labels=NUM_LABELS)

    logits = bert_rnn_forward(hidden_states, attention_mask, params,
                              n_hl=N_HL, units=UNITS, num_labels=NUM_LABELS,
                              t_blk=8)
    jax.block_until_ready(logits)
    assert logits.shape == (B, S, NUM_LABELS)
    assert bool(jnp.all(jnp.isfinite(logits)))
    print("KERNEL_OK")
</pallas_src>

<mosaic_0001>
module attributes {stable_mosaic.version = 11 : i64} {
  func.func @_matmul_bias_kernel(%arg0: i32, %arg1: memref<64x256xbf16, #tpu.memory_space<vmem>>, %arg2: memref<256x768xbf16, #tpu.memory_space<vmem>>, %arg3: memref<1x768xf32, #tpu.memory_space<vmem>>, %arg4: memref<64x768xf32, #tpu.memory_space<vmem>>) attributes {dimension_semantics = [#tpu.dimension_semantics<parallel>], iteration_bounds = array<i64: 1>, scalar_prefetch = 0 : i64, scratch_operands = 0 : i64, tpu.core_type = #tpu.core_type<tc>, window_params = [{transform_indices = @transform_0, window_bounds = array<i64: 64, 256>}, {pipeline_mode = #tpu.pipeline_mode<synchronous>, transform_indices = @transform_1, window_bounds = array<i64: 256, 768>}, {pipeline_mode = #tpu.pipeline_mode<synchronous>, transform_indices = @transform_2, window_bounds = array<i64: 1, 768>}, {transform_indices = @transform_3, window_bounds = array<i64: 64, 768>}]} {
    %c0 = arith.constant 0 : index
    %c0_0 = arith.constant 0 : index
    %0 = vector.load %arg1[%c0, %c0_0] : memref<64x256xbf16, #tpu.memory_space<vmem>>, vector<64x256xbf16>
    %c0_1 = arith.constant 0 : index
    %c0_2 = arith.constant 0 : index
    %1 = vector.load %arg2[%c0_1, %c0_2] : memref<256x768xbf16, #tpu.memory_space<vmem>>, vector<256x768xbf16>
    %cst = arith.constant dense<0.000000e+00> : vector<64x768xf32>
    %2 = tpu.matmul %0, %1, %cst {dimension_numbers = #tpu.dot_dimension_numbers<[1], [0], [0], [1], [0, 0, 1, 1], [], []>} : vector<64x256xbf16>, vector<256x768xbf16>, vector<64x768xf32> -> vector<64x768xf32>
    %c0_3 = arith.constant 0 : index
    %c0_4 = arith.constant 0 : index
    %3 = vector.load %arg3[%c0_3, %c0_4] : memref<1x768xf32, #tpu.memory_space<vmem>>, vector<1x768xf32>
    %4 = vector.broadcast %3 : vector<1x768xf32> to vector<64x768xf32>
    %5 = arith.addf %2, %4 : vector<64x768xf32>
    %c0_5 = arith.constant 0 : index
    %c0_6 = arith.constant 0 : index
    %6 = vector.load %arg4[%c0_5, %c0_6] : memref<64x768xf32, #tpu.memory_space<vmem>>, vector<64x768xf32>
    tpu.vector_store %arg4[%c0_5, %c0_6], %5 {strides = array<i32>} : memref<64x768xf32, #tpu.memory_space<vmem>>, vector<64x768xf32>,
    return
  }
  func.func @transform_0(%arg0: i32) -> (i32, i32) {
    %c0_i32 = arith.constant 0 : i32
    %c0_i32_0 = arith.constant 0 : i32
    return %arg0, %c0_i32 : i32, i32
  }
  func.func @transform_1(%arg0: i32) -> (i32, i32) {
    %c0_i32 = arith.constant 0 : i32
    %c0_i32_0 = arith.constant 0 : i32
    %c0_i32_1 = arith.constant 0 : i32
    return %c0_i32, %c0_i32_0 : i32, i32
  }
  func.func @transform_2(%arg0: i32) -> (i32, i32) {
    %c0_i32 = arith.constant 0 : i32
    %c0_i32_0 = arith.constant 0 : i32
    %c0_i32_1 = arith.constant 0 : i32
    return %c0_i32, %c0_i32_0 : i32, i32
  }
  func.func @transform_3(%arg0: i32) -> (i32, i32) {
    %c0_i32 = arith.constant 0 : i32
    %c0_i32_0 = arith.constant 0 : i32
    return %arg0, %c0_i32 : i32, i32
  }
}

</mosaic_0001>

<llo_original>
// kernel: tpu_custom_call.1
$region0: #{tpu_custom_call.1}
  #allocation0 [shape = 'u32[]', space=smem, size = 0x4, offset = 0x4, fixed_abs, tag = 'smem constant byte address 0x4 - core index']
  #allocation1 [shape = 'u32[144,128]{1,0:T(1,128)}', space=vmem, size = 0x12000, scoped, tag = 'internal scratch']
  %s0 = inlined_call_operand.hbm [shape: bf16[64,256], index: 0, kind: input, shape index: {}]
  %s1 = inlined_call_operand.hbm [shape: bf16[256,768], index: 1, kind: input, shape index: {}]
  %s2 = inlined_call_operand.vmem [shape: f32[1,768], index: 2, kind: input, shape index: {}]
  %s3 = inlined_call_operand.hbm [shape: f32[64,768], index: 3, kind: output, shape index: {}]
  %s4 = sld [smem:[#allocation0]]
  $region30: #{tpu_custom_call.1} parent=0
    _
  %s6 = ssub.s32 1, %s4
  %s7 = scalar_select 0, %s6, %s4
  $region1: #{tpu_custom_call.1} parent=0
    #allocation2 [shape = 'u8[32768]{0}', space=vmem, size = 0x8000, scoped, tag = 'input window, operand 0, single buffered']
    #allocation3 [shape = 's32[1]{0}', space=sflag, size = 0x4, scoped, tag = 'scoped memory for tpu_custom_call.1']
    #allocation4 [shape = 's32[1]{0}', space=sflag, size = 0x4, scoped, tag = 'scoped memory for tpu_custom_call.1']
    #allocation5 [shape = 'u8[393216]{0}', space=vmem, size = 0x60000, scoped, tag = 'input window, operand 1, single buffered']
    #allocation6 [shape = 's32[1]{0}', space=sflag, size = 0x4, scoped, tag = 'scoped memory for tpu_custom_call.1']
    #allocation7 [shape = 'u8[196608]{0}', space=vmem, size = 0x30000, scoped, tag = 'output window, operand 0, single buffered']
    %8 = vsyncpa [#allocation3], 0
    %9 = vsyncpa [#allocation6], 0
    %10 = vsyncpa [#allocation4], 0
    // Predicated region
    $region2: #{tpu_custom_call.1} parent=1 // pred_check
      _
    $region3: #{tpu_custom_call.1} parent=1 // pred_check_branch
      %12 = sbr.rel (0) target = $region5
    $region4: #{tpu_custom_call.1} parent=1 // pred_region
      %s14 = ssub.s32 1024, 1024
      %15 = vsyncadd [#allocation3], %s14
      %s16 = sshll.u32 [#allocation2], 4
      %s17 = int_to_ptr.vmem [resolvable:$true] %s16
      %22 = dma.hbm_to_vmem [thread:$0]  %s0, 1024, %s17, [#allocation3], 128, 128, 8
    $region5: #{tpu_custom_call.1} parent=1 // pred_fallthru
      _
    // Predicated region
    $region6: #{tpu_custom_call.1} parent=1 // pred_check
      _
    $region7: #{tpu_custom_call.1} parent=1 // pred_check_branch
      %24 = sbr.rel (0) target = $region9
    $region8: #{tpu_custom_call.1} parent=1 // pred_region
      %s26 = ssub.s32 12288, 12288
      %27 = vsyncadd [#allocation6], %s26
      %s28 = sshll.u32 [#allocation5], 4
      %s29 = int_to_ptr.vmem [resolvable:$true] %s28
      %34 = dma.hbm_to_vmem [thread:$0]  %s1, 12288, %s29, [#allocation6], 384, 384, 24
    $region9: #{tpu_custom_call.1} parent=1 // pred_fallthru
      _
    // Predicated region
    $region10: #{tpu_custom_call.1} parent=1 // pred_check
      _
    $region11: #{tpu_custom_call.1} parent=1 // pred_check_branch
      %36 = sbr.rel (0) target = $region13
    $region12: #{tpu_custom_call.1} parent=1 // pred_region
      _
    $region13: #{tpu_custom_call.1} parent=1 // pred_fallthru
      _
    // Predicated region
    $region14: #{tpu_custom_call.1} parent=1 // pred_check
      _
    $region15: #{tpu_custom_call.1} parent=1 // pred_check_branch
      %38 = sbr.rel (0) target = $region17
    $region16: #{tpu_custom_call.1} parent=1 // pred_region
      %39 = dma.done [#allocation3], 1024
    $region17: #{tpu_custom_call.1} parent=1 // pred_fallthru
      _
    // Predicated region
    $region18: #{tpu_custom_call.1} parent=1 // pred_check
      _
    $region19: #{tpu_custom_call.1} parent=1 // pred_check_branch
      %41 = sbr.rel (0) target = $region21
    $region20: #{tpu_custom_call.1} parent=1 // pred_region
      %42 = dma.done [#allocation6], 12288
    $region21: #{tpu_custom_call.1} parent=1 // pred_fallthru
      _
    %v43 = vld [vmem:[#allocation2] sm:$0xff]
    %v44 = vld [vmem:[#allocation2 + $0x8] sm:$0xff]
    %v45 = vld [vmem:[#allocation2 + $0x10] sm:$0xff]
    %v46 = vld [vmem:[#allocation2 + $0x18] sm:$0xff]
    %v47 = vld [vmem:[#allocation2 + $0x20] sm:$0xff]
    %v48 = vld [vmem:[#allocation2 + $0x28] sm:$0xff]
    %v49 = vld [vmem:[#allocation2 + $0x30] sm:$0xff]
    %v50 = vld [vmem:[#allocation2 + $0x38] sm:$0xff]
    %v51 = vld [vmem:[#allocation5] sm:$0xff]
    %v52 = vld [vmem:[#allocation5 + $0x8] sm:$0xff]
    %v53 = vld [vmem:[#allocation5 + $0x10] sm:$0xff]
    %v54 = vld [vmem:[#allocation5 + $0x18] sm:$0xff]
    %v55 = vld [vmem:[#allocation5 + $0x20] sm:$0xff]
    %v56 = vld [vmem:[#allocation5 + $0x28] sm:$0xff]
    %v57 = vld [vmem:[#allocation5 + $0x30] sm:$0xff]
    %v58 = vld [vmem:[#allocation5 + $0x38] sm:$0xff]
    %v59 = vld [vmem:[#allocation5 + $0x40] sm:$0xff]
    %v60 = vld [vmem:[#allocation5 + $0x48] sm:$0xff]
    %v61 = vld [vmem:[#allocation5 + $0x50] sm:$0xff]
    %v62 = vld [vmem:[#allocation5 + $0x58] sm:$0xff]
    %v63 = vld [vmem:[#allocation5 + $0x60] sm:$0xff]
    %v64 = vld [vmem:[#allocation5 + $0x68] sm:$0xff]
    %v65 = vld [vmem:[#allocation5 + $0x70] sm:$0xff]
    %v66 = vld [vmem:[#allocation5 + $0x78] sm:$0xff]
    %v67 = vld [vmem:[#allocation5 + $0x80] sm:$0xff]
    %v68 = vld [vmem:[#allocation5 + $0x88] sm:$0xff]
    %v69 = vld [vmem:[#allocation5 + $0x90] sm:$0xff]
    %v70 = vld [vmem:[#allocation5 + $0x98] sm:$0xff]
    %v71 = vld [vmem:[#allocation5 + $0xa0] sm:$0xff]
    %v72 = vld [vmem:[#allocation5 + $0xa8] sm:$0xff]
    %v73 = vld [vmem:[#allocation5 + $0xb0] sm:$0xff]
    %v74 = vld [vmem:[#allocation5 + $0xb8] sm:$0xff]
    %v75 = vld [vmem:[#allocation5 + $0xc0] sm:$0xff]
    %v76 = vld [vmem:[#allocation5 + $0xc8] sm:$0xff]
    %v77 = vld [vmem:[#allocation5 + $0xd0] sm:$0xff]
    %v78 = vld [vmem:[#allocation5 + $0xd8] sm:$0xff]
    %v79 = vld [vmem:[#allocation5 + $0xe0] sm:$0xff]
    %v80 = vld [vmem:[#allocation5 + $0xe8] sm:$0xff]
    %v81 = vld [vmem:[#allocation5 + $0xf0] sm:$0xff]
    %v82 = vld [vmem:[#allocation5 + $0xf8] sm:$0xff]
    %v83 = vld [vmem:[#allocation5 + $0x100] sm:$0xff]
    %v84 = vld [vmem:[#allocation5 + $0x108] sm:$0xff]
    %v85 = vld [vmem:[#allocation5 + $0x110] sm:$0xff]
    %v86 = vld [vmem:[#allocation5 + $0x118] sm:$0xff]
    %v87 = vld [vmem:[#allocation5 + $0x120] sm:$0xff]
    %v88 = vld [vmem:[#allocation5 + $0x128] sm:$0xff]
    %v89 = vld [vmem:[#allocation5 + $0x130] sm:$0xff]
    %v90 = vld [vmem:[#allocation5 + $0x138] sm:$0xff]
    %v91 = vld [vmem:[#allocation5 + $0x140] sm:$0xff]
    %v92 = vld [vmem:[#allocation5 + $0x148] sm:$0xff]
    %v93 = vld [vmem:[#allocation5 + $0x150] sm:$0xff]
    %v94 = vld [vmem:[#allocation5 + $0x158] sm:$0xff]
    %v95 = vld [vmem:[#allocation5 + $0x160] sm:$0xff]
    %v96 = vld [vmem:[#allocation5 + $0x168] sm:$0xff]
    %v97 = vld [vmem:[#allocation5 + $0x170] sm:$0xff]
    %v98 = vld [vmem:[#allocation5 + $0x178] sm:$0xff]
    %v99 = vld [vmem:[#allocation5 + $0x180] sm:$0xff]
    %v100 = vld [vmem:[#allocation5 + $0x188] sm:$0xff]
    %v101 = vld [vmem:[#allocation5 + $0x190] sm:$0xff]
    %v102 = vld [vmem:[#allocation5 + $0x198] sm:$0xff]
    %v103 = vld [vmem:[#allocation5 + $0x1a0] sm:$0xff]
    %v104 = vld [vmem:[#allocation5 + $0x1a8] sm:$0xff]
    %v105 = vld [vmem:[#allocation5 + $0x1b0] sm:$0xff]
    %v106 = vld [vmem:[#allocation5 + $0x1b8] sm:$0xff]
    %v107 = vld [vmem:[#allocation5 + $0x1c0] sm:$0xff]
    %v108 = vld [vmem:[#allocation5 + $0x1c8] sm:$0xff]
    %v109 = vld [vmem:[#allocation5 + $0x1d0] sm:$0xff]
    %v110 = vld [vmem:[#allocation5 + $0x1d8] sm:$0xff]
    %v111 = vld [vmem:[#allocation5 + $0x1e0] sm:$0xff]
    %v112 = vld [vmem:[#allocation5 + $0x1e8] sm:$0xff]
    %v113 = vld [vmem:[#allocation5 + $0x1f0] sm:$0xff]
    %v114 = vld [vmem:[#allocation5 + $0x1f8] sm:$0xff]
    %v115 = vld [vmem:[#allocation5 + $0x200] sm:$0xff]
    %v116 = vld [vmem:[#allocation5 + $0x208] sm:$0xff]
    %v117 = vld [vmem:[#allocation5 + $0x210] sm:$0xff]
    %v118 = vld [vmem:[#allocation5 + $0x218] sm:$0xff]
    %v119 = vld [vmem:[#allocation5 + $0x220] sm:$0xff]
    %v120 = vld [vmem:[#allocation5 + $0x228] sm:$0xff]
    %v121 = vld [vmem:[#allocation5 + $0x230] sm:$0xff]
    %v122 = vld [vmem:[#allocation5 + $0x238] sm:$0xff]
    %v123 = vld [vmem:[#allocation5 + $0x240] sm:$0xff]
    %v124 = vld [vmem:[#allocation5 + $0x248] sm:$0xff]
    %v125 = vld [vmem:[#allocation5 + $0x250] sm:$0xff]
    %v126 = vld [vmem:[#allocation5 + $0x258] sm:$0xff]
    %v127 = vld [vmem:[#allocation5 + $0x260] sm:$0xff]
    %v128 = vld [vmem:[#allocation5 + $0x268] sm:$0xff]
    %v129 = vld [vmem:[#allocation5 + $0x270] sm:$0xff]
    %v130 = vld [vmem:[#allocation5 + $0x278] sm:$0xff]
    %v131 = vld [vmem:[#allocation5 + $0x280] sm:$0xff]
    %v132 = vld [vmem:[#allocation5 + $0x288] sm:$0xff]
    %v133 = vld [vmem:[#allocation5 + $0x290] sm:$0xff]
    %v134 = vld [vmem:[#allocation5 + $0x298] sm:$0xff]
    %v135 = vld [vmem:[#allocation5 + $0x2a0] sm:$0xff]
    %v136 = vld [vmem:[#allocation5 + $0x2a8] sm:$0xff]
    %v137 = vld [vmem:[#allocation5 + $0x2b0] sm:$0xff]
    %v138 = vld [vmem:[#allocation5 + $0x2b8] sm:$0xff]
    %v139 = vld [vmem:[#allocation5 + $0x2c0] sm:$0xff]
    %v140 = vld [vmem:[#allocation5 + $0x2c8] sm:$0xff]
    %v141 = vld [vmem:[#allocation5 + $0x2d0] sm:$0xff]
    %v142 = vld [vmem:[#allocation5 + $0x2d8] sm:$0xff]
    %v143 = vld [vmem:[#allocation5 + $0x2e0] sm:$0xff]
    %v144 = vld [vmem:[#allocation5 + $0x2e8] sm:$0xff]
    %v145 = vld [vmem:[#allocation5 + $0x2f0] sm:$0xff]
    %v146 = vld [vmem:[#allocation5 + $0x2f8] sm:$0xff]
    %v147 = vld [vmem:[%s2] sm:$0x3f]
    %v149 = vlaneseq
    %v150 = vshrl.u32 %v149, 7
    %v151 = vsub.s32 0, %v150
    %v152 = vrot.slane %v147, %v151
    %v153 = vlaneseq
    %v154 = vshrl.u32 %v153, 7
    %v155 = vsub.s32 1, %v154
    %v156 = vrot.slane %v147, %v155
    %v157 = vlaneseq
    %v158 = vshrl.u32 %v157, 7
    %v159 = vsub.s32 2, %v158
    %v160 = vrot.slane %v147, %v159
    %v161 = vlaneseq
    %v162 = vshrl.u32 %v161, 7
    %v163 = vsub.s32 3, %v162
    %v164 = vrot.slane %v147, %v163
    %v165 = vlaneseq
    %v166 = vshrl.u32 %v165, 7
    %v167 = vsub.s32 4, %v166
    %v168 = vrot.slane %v147, %v167
    %v169 = vlaneseq
    %v170 = vshrl.u32 %v169, 7
    %v171 = vsub.s32 5, %v170
    %v172 = vrot.slane %v147, %v171
    %v187 = vunpack.c.l.b16 %v43
    %v188 = vunpack.c.h.b16 %v43
    %v189 = vunpack.c.l.b16 %v44
    %v190 = vunpack.c.h.b16 %v44
    %v191 = vunpack.c.l.b16 %v45
    %v192 = vunpack.c.h.b16 %v45
    %v193 = vunpack.c.l.b16 %v46
    %v194 = vunpack.c.h.b16 %v46
    %v195 = vunpack.c.l.b16 %v47
    %v196 = vunpack.c.h.b16 %v47
    %v197 = vunpack.c.l.b16 %v48
    %v198 = vunpack.c.h.b16 %v48
    %v199 = vunpack.c.l.b16 %v49
    %v200 = vunpack.c.h.b16 %v49
    %v201 = vunpack.c.l.b16 %v50
    %v202 = vunpack.c.h.b16 %v50
    %v203 = vpack.c.b16 %v189, %v187
    %v204 = vpack.c.b16 %v190, %v188
    %v205 = vpack.c.b16 %v193, %v191
    %v206 = vpack.c.b16 %v194, %v192
    %v207 = vpack.c.b16 %v197, %v195
    %v208 = vpack.c.b16 %v198, %v196
    %v209 = vpack.c.b16 %v201, %v199
    %v210 = vpack.c.b16 %v202, %v200
    %v315 = vunpack.c.l.b16 %v51
    %v316 = vunpack.c.h.b16 %v51
    %v317 = vunpack.c.l.b16 %v52
    %v318 = vunpack.c.h.b16 %v52
    %v319 = vunpack.c.l.b16 %v53
    %v320 = vunpack.c.h.b16 %v53
    %v321 = vunpack.c.l.b16 %v54
    %v322 = vunpack.c.h.b16 %v54
    %v323 = vunpack.c.l.b16 %v55
    %v324 = vunpack.c.h.b16 %v55
    %v325 = vunpack.c.l.b16 %v56
    %v326 = vunpack.c.h.b16 %v56
    %v327 = vunpack.c.l.b16 %v57
    %v328 = vunpack.c.h.b16 %v57
    %v329 = vunpack.c.l.b16 %v58
    %v330 = vunpack.c.h.b16 %v58
    %v331 = vunpack.c.l.b16 %v59
    %v332 = vunpack.c.h.b16 %v59
    %v333 = vunpack.c.l.b16 %v60
    %v334 = vunpack.c.h.b16 %v60
    %v335 = vunpack.c.l.b16 %v61
    %v336 = vunpack.c.h.b16 %v61
    %v337 = vunpack.c.l.b16 %v62
    %v338 = vunpack.c.h.b16 %v62
    %v339 = vunpack.c.l.b16 %v63
    %v340 = vunpack.c.h.b16 %v63
    %v341 = vunpack.c.l.b16 %v64
    %v342 = vunpack.c.h.b16 %v64
    %v343 = vunpack.c.l.b16 %v65
    %v344 = vunpack.c.h.b16 %v65
    %v345 = vunpack.c.l.b16 %v66
    %v346 = vunpack.c.h.b16 %v66
    %v347 = vunpack.c.l.b16 %v67
    %v348 = vunpack.c.h.b16 %v67
    %v349 = vunpack.c.l.b16 %v68
    %v350 = vunpack.c.h.b16 %v68
    %v351 = vunpack.c.l.b16 %v69
    %v352 = vunpack.c.h.b16 %v69
    %v353 = vunpack.c.l.b16 %v70
    %v354 = vunpack.c.h.b16 %v70
    %v355 = vunpack.c.l.b16 %v71
    %v356 = vunpack.c.h.b16 %v71
    %v357 = vunpack.c.l.b16 %v72
    %v358 = vunpack.c.h.b16 %v72
    %v359 = vunpack.c.l.b16 %v73
    %v360 = vunpack.c.h.b16 %v73
    %v361 = vunpack.c.l.b16 %v74
    %v362 = vunpack.c.h.b16 %v74
    %v363 = vunpack.c.l.b16 %v75
    %v364 = vunpack.c.h.b16 %v75
    %v365 = vunpack.c.l.b16 %v76
    %v366 = vunpack.c.h.b16 %v76
    %v367 = vunpack.c.l.b16 %v77
    %v368 = vunpack.c.h.b16 %v77
    %v369 = vunpack.c.l.b16 %v78
    %v370 = vunpack.c.h.b16 %v78
    %v371 = vunpack.c.l.b16 %v79
    %v372 = vunpack.c.h.b16 %v79
    %v373 = vunpack.c.l.b16 %v80
    %v374 = vunpack.c.h.b16 %v80
    %v375 = vunpack.c.l.b16 %v81
    %v376 = vunpack.c.h.b16 %v81
    %v377 = vunpack.c.l.b16 %v82
    %v378 = vunpack.c.h.b16 %v82
    %v379 = vunpack.c.l.b16 %v83
    %v380 = vunpack.c.h.b16 %v83
    %v381 = vunpack.c.l.b16 %v84
    %v382 = vunpack.c.h.b16 %v84
    %v383 = vunpack.c.l.b16 %v85
    %v384 = vunpack.c.h.b16 %v85
    %v385 = vunpack.c.l.b16 %v86
    %v386 = vunpack.c.h.b16 %v86
    %v387 = vunpack.c.l.b16 %v87
    %v388 = vunpack.c.h.b16 %v87
    %v389 = vunpack.c.l.b16 %v88
    %v390 = vunpack.c.h.b16 %v88
    %v391 = vunpack.c.l.b16 %v89
    %v392 = vunpack.c.h.b16 %v89
    %v393 = vunpack.c.l.b16 %v90
    %v394 = vunpack.c.h.b16 %v90
    %v395 = vunpack.c.l.b16 %v91
    %v396 = vunpack.c.h.b16 %v91
    %v397 = vunpack.c.l.b16 %v92
    %v398 = vunpack.c.h.b16 %v92
    %v399 = vunpack.c.l.b16 %v93
    %v400 = vunpack.c.h.b16 %v93
    %v401 = vunpack.c.l.b16 %v94
    %v402 = vunpack.c.h.b16 %v94
    %v403 = vunpack.c.l.b16 %v95
    %v404 = vunpack.c.h.b16 %v95
    %v405 = vunpack.c.l.b16 %v96
    %v406 = vunpack.c.h.b16 %v96
    %v407 = vunpack.c.l.b16 %v97
    %v408 = vunpack.c.h.b16 %v97
    %v409 = vunpack.c.l.b16 %v98
    %v410 = vunpack.c.h.b16 %v98
    %v411 = vunpack.c.l.b16 %v99
    %v412 = vunpack.c.h.b16 %v99
    %v413 = vunpack.c.l.b16 %v100
    %v414 = vunpack.c.h.b16 %v100
    %v415 = vunpack.c.l.b16 %v101
    %v416 = vunpack.c.h.b16 %v101
    %v417 = vunpack.c.l.b16 %v102
    %v418 = vunpack.c.h.b16 %v102
    %v419 = vunpack.c.l.b16 %v103
    %v420 = vunpack.c.h.b16 %v103
    %v421 = vunpack.c.l.b16 %v104
    %v422 = vunpack.c.h.b16 %v104
    %v423 = vunpack.c.l.b16 %v105
    %v424 = vunpack.c.h.b16 %v105
    %v425 = vunpack.c.l.b16 %v106
    %v426 = vunpack.c.h.b16 %v106
    %v427 = vunpack.c.l.b16 %v107
    %v428 = vunpack.c.h.b16 %v107
    %v429 = vunpack.c.l.b16 %v108
    %v430 = vunpack.c.h.b16 %v108
    %v431 = vunpack.c.l.b16 %v109
    %v432 = vunpack.c.h.b16 %v109
    %v433 = vunpack.c.l.b16 %v110
    %v434 = vunpack.c.h.b16 %v110
    %v435 = vunpack.c.l.b16 %v111
    %v436 = vunpack.c.h.b16 %v111
    %v437 = vunpack.c.l.b16 %v112
    %v438 = vunpack.c.h.b16 %v112
    %v439 = vunpack.c.l.b16 %v113
    %v440 = vunpack.c.h.b16 %v113
    %v441 = vunpack.c.l.b16 %v114
    %v442 = vunpack.c.h.b16 %v114
    %v443 = vunpack.c.l.b16 %v115
    %v444 = vunpack.c.h.b16 %v115
    %v445 = vunpack.c.l.b16 %v116
    %v446 = vunpack.c.h.b16 %v116
    %v447 = vunpack.c.l.b16 %v117
    %v448 = vunpack.c.h.b16 %v117
    %v449 = vunpack.c.l.b16 %v118
    %v450 = vunpack.c.h.b16 %v118
    %v451 = vunpack.c.l.b16 %v119
    %v452 = vunpack.c.h.b16 %v119
    %v453 = vunpack.c.l.b16 %v120
    %v454 = vunpack.c.h.b16 %v120
    %v455 = vunpack.c.l.b16 %v121
    %v456 = vunpack.c.h.b16 %v121
    %v457 = vunpack.c.l.b16 %v122
    %v458 = vunpack.c.h.b16 %v122
    %v459 = vunpack.c.l.b16 %v123
    %v460 = vunpack.c.h.b16 %v123
    %v461 = vunpack.c.l.b16 %v124
    %v462 = vunpack.c.h.b16 %v124
    %v463 = vunpack.c.l.b16 %v125
    %v464 = vunpack.c.h.b16 %v125
    %v465 = vunpack.c.l.b16 %v126
    %v466 = vunpack.c.h.b16 %v126
    %v467 = vunpack.c.l.b16 %v127
    %v468 = vunpack.c.h.b16 %v127
    %v469 = vunpack.c.l.b16 %v128
    %v470 = vunpack.c.h.b16 %v128
    %v471 = vunpack.c.l.b16 %v129
    %v472 = vunpack.c.h.b16 %v129
    %v473 = vunpack.c.l.b16 %v130
    %v474 = vunpack.c.h.b16 %v130
    %v475 = vunpack.c.l.b16 %v131
    %v476 = vunpack.c.h.b16 %v131
    %v477 = vunpack.c.l.b16 %v132
    %v478 = vunpack.c.h.b16 %v132
    %v479 = vunpack.c.l.b16 %v133
    %v480 = vunpack.c.h.b16 %v133
    %v481 = vunpack.c.l.b16 %v134
    %v482 = vunpack.c.h.b16 %v134
    %v483 = vunpack.c.l.b16 %v135
    %v484 = vunpack.c.h.b16 %v135
    %v485 = vunpack.c.l.b16 %v136
    %v486 = vunpack.c.h.b16 %v136
    %v487 = vunpack.c.l.b16 %v137
    %v488 = vunpack.c.h.b16 %v137
    %v489 = vunpack.c.l.b16 %v138
    %v490 = vunpack.c.h.b16 %v138
    %v491 = vunpack.c.l.b16 %v139
    %v492 = vunpack.c.h.b16 %v139
    %v493 = vunpack.c.l.b16 %v140
    %v494 = vunpack.c.h.b16 %v140
    %v495 = vunpack.c.l.b16 %v141
    %v496 = vunpack.c.h.b16 %v141
    %v497 = vunpack.c.l.b16 %v142
    %v498 = vunpack.c.h.b16 %v142
    %v499 = vunpack.c.l.b16 %v143
    %v500 = vunpack.c.h.b16 %v143
    %v501 = vunpack.c.l.b16 %v144
    %v502 = vunpack.c.h.b16 %v144
    %v503 = vunpack.c.l.b16 %v145
    %v504 = vunpack.c.h.b16 %v145
    %v505 = vunpack.c.l.b16 %v146
    %v506 = vunpack.c.h.b16 %v146
    %v507 = vpack.c.b16 %v321, %v315
    %v508 = vpack.c.b16 %v322, %v316
    %v509 = vpack.c.b16 %v323, %v317
    %v510 = vpack.c.b16 %v324, %v318
    %v511 = vpack.c.b16 %v325, %v319
    %v512 = vpack.c.b16 %v326, %v320
    %v513 = vpack.c.b16 %v333, %v327
    %v514 = vpack.c.b16 %v334, %v328
    %v515 = vpack.c.b16 %v335, %v329
    %v516 = vpack.c.b16 %v336, %v330
    %v517 = vpack.c.b16 %v337, %v331
    %v518 = vpack.c.b16 %v338, %v332
    %v519 = vpack.c.b16 %v345, %v339
    %v520 = vpack.c.b16 %v346, %v340
    %v521 = vpack.c.b16 %v347, %v341
    %v522 = vpack.c.b16 %v348, %v342
    %v523 = vpack.c.b16 %v349, %v343
    %v524 = vpack.c.b16 %v350, %v344
    %v525 = vpack.c.b16 %v357, %v351
    %v526 = vpack.c.b16 %v358, %v352
    %v527 = vpack.c.b16 %v359, %v353
    %v528 = vpack.c.b16 %v360, %v354
    %v529 = vpack.c.b16 %v361, %v355
    %v530 = vpack.c.b16 %v362, %v356
    %v531 = vpack.c.b16 %v369, %v363
    %v532 = vpack.c.b16 %v370, %v364
    %v533 = vpack.c.b16 %v371, %v365
    %v534 = vpack.c.b16 %v372, %v366
    %v535 = vpack.c.b16 %v373, %v367
    %v536 = vpack.c.b16 %v374, %v368
    %v537 = vpack.c.b16 %v381, %v375
    %v538 = vpack.c.b16 %v382, %v376
    %v539 = vpack.c.b16 %v383, %v377
    %v540 = vpack.c.b16 %v384, %v378
    %v541 = vpack.c.b16 %v385, %v379
    %v542 = vpack.c.b16 %v386, %v380
    %v543 = vpack.c.b16 %v393, %v387
    %v544 = vpack.c.b16 %v394, %v388
    %v545 = vpack.c.b16 %v395, %v389
    %v546 = vpack.c.b16 %v396, %v390
    %v547 = vpack.c.b16 %v397, %v391
    %v548 = vpack.c.b16 %v398, %v392
    %v549 = vpack.c.b16 %v405, %v399
    %v550 = vpack.c.b16 %v406, %v400
    %v551 = vpack.c.b16 %v407, %v401
    %v552 = vpack.c.b16 %v408, %v402
    %v553 = vpack.c.b16 %v409, %v403
    %v554 = vpack.c.b16 %v410, %v404
    %v555 = vpack.c.b16 %v417, %v411
    %v556 = vpack.c.b16 %v418, %v412
    %v557 = vpack.c.b16 %v419, %v413
    %v558 = vpack.c.b16 %v420, %v414
    %v559 = vpack.c.b16 %v421, %v415
    %v560 = vpack.c.b16 %v422, %v416
    %v561 = vpack.c.b16 %v429, %v423
    %v562 = vpack.c.b16 %v430, %v424
    %v563 = vpack.c.b16 %v431, %v425
    %v564 = vpack.c.b16 %v432, %v426
    %v565 = vpack.c.b16 %v433, %v427
    %v566 = vpack.c.b16 %v434, %v428
    %v567 = vpack.c.b16 %v441, %v435
    %v568 = vpack.c.b16 %v442, %v436
    %v569 = vpack.c.b16 %v443, %v437
    %v570 = vpack.c.b16 %v444, %v438
    %v571 = vpack.c.b16 %v445, %v439
    %v572 = vpack.c.b16 %v446, %v440
    %v573 = vpack.c.b16 %v453, %v447
    %v574 = vpack.c.b16 %v454, %v448
    %v575 = vpack.c.b16 %v455, %v449
    %v576 = vpack.c.b16 %v456, %v450
    %v577 = vpack.c.b16 %v457, %v451
    %v578 = vpack.c.b16 %v458, %v452
    %v579 = vpack.c.b16 %v465, %v459
    %v580 = vpack.c.b16 %v466, %v460
    %v581 = vpack.c.b16 %v467, %v461
    %v582 = vpack.c.b16 %v468, %v462
    %v583 = vpack.c.b16 %v469, %v463
    %v584 = vpack.c.b16 %v470, %v464
    %v585 = vpack.c.b16 %v477, %v471
    %v586 = vpack.c.b16 %v478, %v472
    %v587 = vpack.c.b16 %v479, %v473
    %v588 = vpack.c.b16 %v480, %v474
    %v589 = vpack.c.b16 %v481, %v475
    %v590 = vpack.c.b16 %v482, %v476
    %v591 = vpack.c.b16 %v489, %v483
    %v592 = vpack.c.b16 %v490, %v484
    %v593 = vpack.c.b16 %v491, %v485
    %v594 = vpack.c.b16 %v492, %v486
    %v595 = vpack.c.b16 %v493, %v487
    %v596 = vpack.c.b16 %v494, %v488
    %v597 = vpack.c.b16 %v501, %v495
    %v598 = vpack.c.b16 %v502, %v496
    %v599 = vpack.c.b16 %v503, %v497
    %v600 = vpack.c.b16 %v504, %v498
    %v601 = vpack.c.b16 %v505, %v499
    %v602 = vpack.c.b16 %v506, %v500
    %699 = vmatprep.subr.bf16.mxu0 %v508
    %700 = vmatpush1.bf16.msra.mxu0 %v507
    %701 = vmatprep.subr.bf16.mxu0 %v514
    %702 = vmatpush1.bf16.msra.mxu0 %v513
    %703 = vmatprep.subr.bf16.mxu0 %v520
    %704 = vmatpush1.bf16.msra.mxu0 %v519
    %705 = vmatprep.subr.bf16.mxu0 %v526
    %706 = vmatpush1.bf16.msra.mxu0 %v525
    %707 = vmatprep.subr.bf16.mxu0 %v532
    %708 = vmatpush1.bf16.msra.mxu0 %v531
    %709 = vmatprep.subr.bf16.mxu0 %v538
    %710 = vmatpush1.bf16.msra.mxu0 %v537
    %711 = vmatprep.subr.bf16.mxu0 %v544
    %712 = vmatpush1.bf16.msra.mxu0 %v543
    %713 = vmatprep.subr.bf16.mxu0 %v550
    %714 = vmatpush1.bf16.msra.mxu0 %v549
    %715 = vmatprep.subr.bf16.mxu0 %v556
    %716 = vmatpush1.bf16.msra.mxu0 %v555
    %717 = vmatprep.subr.bf16.mxu0 %v562
    %718 = vmatpush1.bf16.msra.mxu0 %v561
    %719 = vmatprep.subr.bf16.mxu0 %v568
    %720 = vmatpush1.bf16.msra.mxu0 %v567
    %721 = vmatprep.subr.bf16.mxu0 %v574
    %722 = vmatpush1.bf16.msra.mxu0 %v573
    %723 = vmatprep.subr.bf16.mxu0 %v580
    %724 = vmatpush1.bf16.msra.mxu0 %v579
    %725 = vmatprep.subr.bf16.mxu0 %v586
    %726 = vmatpush1.bf16.msra.mxu0 %v585
    %727 = vmatprep.subr.bf16.mxu0 %v592
    %728 = vmatpush1.bf16.msra.mxu0 %v591
    %729 = vmatprep.subr.bf16.mxu0 %v598
    %730 = vmatpush1.bf16.msra.mxu0 %v597
    %731 = vmatprep.mubr.bf16.mxu0 %v204
    %732 = vmatmul.mubr.bf16.gmra.mrb[0].mxu0 %v203
    %v733 = vpop.f32.mrb[0].mxu0
    %v734 = vadd.f32 %v152, %v733
    %v735 = vpop.f32.mrb[0].mxu0
    %v736 = vadd.f32 %v156, %v735
    %v737 = vpop.f32.mrb[0].mxu0
    %v738 = vadd.f32 %v152, %v737
    %v739 = vpop.f32.mrb[0].mxu0
    %v740 = vadd.f32 %v156, %v739
    %741 = vmatprep.mubr.bf16.mxu0 %v206
    %742 = vmatmul.mubr.bf16.gmra.mrb[0].mxu0 %v205
    %v743 = vpop.f32.mrb[0].mxu0
    %v744 = vadd.f32 %v152, %v743
    %v745 = vpop.f32.mrb[0].mxu0
    %v746 = vadd.f32 %v156, %v745
    %v747 = vpop.f32.mrb[0].mxu0
    %v748 = vadd.f32 %v152, %v747
    %v749 = vpop.f32.mrb[0].mxu0
    %v750 = vadd.f32 %v156, %v749
    %751 = vmatprep.mubr.bf16.mxu0 %v208
    %752 = vmatmul.mubr.bf16.gmra.mrb[0].mxu0 %v207
    %v753 = vpop.f32.mrb[0].mxu0
    %v754 = vadd.f32 %v152, %v753
    %v755 = vpop.f32.mrb[0].mxu0
    %v756 = vadd.f32 %v156, %v755
    %v757 = vpop.f32.mrb[0].mxu0
    %v758 = vadd.f32 %v152, %v757
    %v759 = vpop.f32.mrb[0].mxu0
    %v760 = vadd.f32 %v156, %v759
    %761 = vmatprep.mubr.bf16.mxu0 %v210
    %762 = vmatmul.mubr.bf16.gmra.mrb[0].mxu0 %v209
    %v763 = vpop.f32.mrb[0].mxu0
    %v764 = vadd.f32 %v152, %v763
    %v765 = vpop.f32.mrb[0].mxu0
    %v766 = vadd.f32 %v156, %v765
    %v767 = vpop.f32.mrb[0].mxu0
    %v768 = vadd.f32 %v152, %v767
    %v769 = vpop.f32.mrb[0].mxu0
    %v770 = vadd.f32 %v156, %v769
    %771 = vdwg.mxu0
    %772 = vmatprep.subr.bf16.mxu0 %v510
    %773 = vmatpush1.bf16.msra.mxu0 %v509
    %774 = vmatprep.subr.bf16.mxu0 %v516
    %775 = vmatpush1.bf16.msra.mxu0 %v515
    %776 = vmatprep.subr.bf16.mxu0 %v522
    %777 = vmatpush1.bf16.msra.mxu0 %v521
    %778 = vmatprep.subr.bf16.mxu0 %v528
    %779 = vmatpush1.bf16.msra.mxu0 %v527
    %780 = vmatprep.subr.bf16.mxu0 %v534
    %781 = vmatpush1.bf16.msra.mxu0 %v533
    %782 = vmatprep.subr.bf16.mxu0 %v540
    %783 = vmatpush1.bf16.msra.mxu0 %v539
    %784 = vmatprep.subr.bf16.mxu0 %v546
    %785 = vmatpush1.bf16.msra.mxu0 %v545
    %786 = vmatprep.subr.bf16.mxu0 %v552
    %787 = vmatpush1.bf16.msra.mxu0 %v551
    %788 = vmatprep.subr.bf16.mxu0 %v558
    %789 = vmatpush1.bf16.msra.mxu0 %v557
    %790 = vmatprep.subr.bf16.mxu0 %v564
    %791 = vmatpush1.bf16.msra.mxu0 %v563
    %792 = vmatprep.subr.bf16.mxu0 %v570
    %793 = vmatpush1.bf16.msra.mxu0 %v569
    %794 = vmatprep.subr.bf16.mxu0 %v576
    %795 = vmatpush1.bf16.msra.mxu0 %v575
    %796 = vmatprep.subr.bf16.mxu0 %v582
    %797 = vmatpush1.bf16.msra.mxu0 %v581
    %798 = vmatprep.subr.bf16.mxu0 %v588
    %799 = vmatpush1.bf16.msra.mxu0 %v587
    %800 = vmatprep.subr.bf16.mxu0 %v594
    %801 = vmatpush1.bf16.msra.mxu0 %v593
    %802 = vmatprep.subr.bf16.mxu0 %v600
    %803 = vmatpush1.bf16.msra.mxu0 %v599
    %804 = vmatprep.mubr.bf16.mxu0 %v204
    %805 = vmatmul.mubr.bf16.gmra.mrb[0].mxu0 %v203
    %v806 = vpop.f32.mrb[0].mxu0
    %v807 = vadd.f32 %v160, %v806
    %v808 = vpop.f32.mrb[0].mxu0
    %v809 = vadd.f32 %v164, %v808
    %v810 = vpop.f32.mrb[0].mxu0
    %v811 = vadd.f32 %v160, %v810
    %v812 = vpop.f32.mrb[0].mxu0
    %v813 = vadd.f32 %v164, %v812
    %814 = vmatprep.mubr.bf16.mxu0 %v206
    %815 = vmatmul.mubr.bf16.gmra.mrb[0].mxu0 %v205
    %v816 = vpop.f32.mrb[0].mxu0
    %v817 = vadd.f32 %v160, %v816
    %v818 = vpop.f32.mrb[0].mxu0
    %v819 = vadd.f32 %v164, %v818
    %v820 = vpop.f32.mrb[0].mxu0
    %v821 = vadd.f32 %v160, %v820
    %v822 = vpop.f32.mrb[0].mxu0
    %v823 = vadd.f32 %v164, %v822
    %824 = vmatprep.mubr.bf16.mxu0 %v208
    %825 = vmatmul.mubr.bf16.gmra.mrb[0].mxu0 %v207
    %v826 = vpop.f32.mrb[0].mxu0
    %v827 = vadd.f32 %v160, %v826
    %v828 = vpop.f32.mrb[0].mxu0
    %v829 = vadd.f32 %v164, %v828
    %v830 = vpop.f32.mrb[0].mxu0
    %v831 = vadd.f32 %v160, %v830
    %v832 = vpop.f32.mrb[0].mxu0
    %v833 = vadd.f32 %v164, %v832
    %834 = vmatprep.mubr.bf16.mxu0 %v210
    %835 = vmatmul.mubr.bf16.gmra.mrb[0].mxu0 %v209
    %v836 = vpop.f32.mrb[0].mxu0
    %v837 = vadd.f32 %v160, %v836
    %v838 = vpop.f32.mrb[0].mxu0
    %v839 = vadd.f32 %v164, %v838
    %v840 = vpop.f32.mrb[0].mxu0
    %v841 = vadd.f32 %v160, %v840
    %v842 = vpop.f32.mrb[0].mxu0
    %v843 = vadd.f32 %v164, %v842
    %844 = vdwg.mxu0
    %845 = vmatprep.subr.bf16.mxu0 %v512
    %846 = vmatpush1.bf16.msra.mxu0 %v511
    %847 = vmatprep.subr.bf16.mxu0 %v518
    %848 = vmatpush1.bf16.msra.mxu0 %v517
    %849 = vmatprep.subr.bf16.mxu0 %v524
    %850 = vmatpush1.bf16.msra.mxu0 %v523
    %851 = vmatprep.subr.bf16.mxu0 %v530
    %852 = vmatpush1.bf16.msra.mxu0 %v529
    %853 = vmatprep.subr.bf16.mxu0 %v536
    %854 = vmatpush1.bf16.msra.mxu0 %v535
    %855 = vmatprep.subr.bf16.mxu0 %v542
    %856 = vmatpush1.bf16.msra.mxu0 %v541
    %857 = vmatprep.subr.bf16.mxu0 %v548
    %858 = vmatpush1.bf16.msra.mxu0 %v547
    %859 = vmatprep.subr.bf16.mxu0 %v554
    %860 = vmatpush1.bf16.msra.mxu0 %v553
    %861 = vmatprep.subr.bf16.mxu0 %v560
    %862 = vmatpush1.bf16.msra.mxu0 %v559
    %863 = vmatprep.subr.bf16.mxu0 %v566
    %864 = vmatpush1.bf16.msra.mxu0 %v565
    %865 = vmatprep.subr.bf16.mxu0 %v572
    %866 = vmatpush1.bf16.msra.mxu0 %v571
    %867 = vmatprep.subr.bf16.mxu0 %v578
    %868 = vmatpush1.bf16.msra.mxu0 %v577
    %869 = vmatprep.subr.bf16.mxu0 %v584
    %870 = vmatpush1.bf16.msra.mxu0 %v583
    %871 = vmatprep.subr.bf16.mxu0 %v590
    %872 = vmatpush1.bf16.msra.mxu0 %v589
    %873 = vmatprep.subr.bf16.mxu0 %v596
    %874 = vmatpush1.bf16.msra.mxu0 %v595
    %875 = vmatprep.subr.bf16.mxu0 %v602
    %876 = vmatpush1.bf16.msra.mxu0 %v601
    %877 = vmatprep.mubr.bf16.mxu0 %v204
    %878 = vmatmul.mubr.bf16.gmra.mrb[0].mxu0 %v203
    %v879 = vpop.f32.mrb[0].mxu0
    %v880 = vadd.f32 %v168, %v879
    %v881 = vpop.f32.mrb[0].mxu0
    %v882 = vadd.f32 %v172, %v881
    %v883 = vpop.f32.mrb[0].mxu0
    %v884 = vadd.f32 %v168, %v883
    %v885 = vpop.f32.mrb[0].mxu0
    %v886 = vadd.f32 %v172, %v885
    %887 = vmatprep.mubr.bf16.mxu0 %v206
    %888 = vmatmul.mubr.bf16.gmra.mrb[0].mxu0 %v205
    %v889 = vpop.f32.mrb[0].mxu0
    %v890 = vadd.f32 %v168, %v889
    %v891 = vpop.f32.mrb[0].mxu0
    %v892 = vadd.f32 %v172, %v891
    %v893 = vpop.f32.mrb[0].mxu0
    %v894 = vadd.f32 %v168, %v893
    %v895 = vpop.f32.mrb[0].mxu0
    %v896 = vadd.f32 %v172, %v895
    %897 = vmatprep.mubr.bf16.mxu0 %v208
    %898 = vmatmul.mubr.bf16.gmra.mrb[0].mxu0 %v207
    %v899 = vpop.f32.mrb[0].mxu0
    %v900 = vadd.f32 %v168, %v899
    %v901 = vpop.f32.mrb[0].mxu0
    %v902 = vadd.f32 %v172, %v901
    %v903 = vpop.f32.mrb[0].mxu0
    %v904 = vadd.f32 %v168, %v903
    %v905 = vpop.f32.mrb[0].mxu0
    %v906 = vadd.f32 %v172, %v905
    %907 = vmatprep.mubr.bf16.mxu0 %v210
    %908 = vmatmul.mubr.bf16.gmra.mrb[0].mxu0 %v209
    %v909 = vpop.f32.mrb[0].mxu0
    %v910 = vadd.f32 %v168, %v909
    %v911 = vpop.f32.mrb[0].mxu0
    %v912 = vadd.f32 %v172, %v911
    %v913 = vpop.f32.mrb[0].mxu0
    %v914 = vadd.f32 %v168, %v913
    %v915 = vpop.f32.mrb[0].mxu0
    %v916 = vadd.f32 %v172, %v915
    %917 = vdwg.mxu0
    %918 = vst [vmem:[#allocation7] sm:$0xff] %v734
    %919 = vst [vmem:[#allocation7 + $0x8] sm:$0xff] %v736
    %920 = vst [vmem:[#allocation7 + $0x10] sm:$0xff] %v807
    %921 = vst [vmem:[#allocation7 + $0x18] sm:$0xff] %v809
    %922 = vst [vmem:[#allocation7 + $0x20] sm:$0xff] %v880
    %923 = vst [vmem:[#allocation7 + $0x28] sm:$0xff] %v882
    %924 = vst [vmem:[#allocation7 + $0x30] sm:$0xff] %v738
    %925 = vst [vmem:[#allocation7 + $0x38] sm:$0xff] %v740
    %926 = vst [vmem:[#allocation7 + $0x40] sm:$0xff] %v811
    %927 = vst [vmem:[#allocation7 + $0x48] sm:$0xff] %v813
    %928 = vst [vmem:[#allocation7 + $0x50] sm:$0xff] %v884
    %929 = vst [vmem:[#allocation7 + $0x58] sm:$0xff] %v886
    %930 = vst [vmem:[#allocation7 + $0x60] sm:$0xff] %v744
    %931 = vst [vmem:[#allocation7 + $0x68] sm:$0xff] %v746
    %932 = vst [vmem:[#allocation7 + $0x70] sm:$0xff] %v817
    %933 = vst [vmem:[#allocation7 + $0x78] sm:$0xff] %v819
    %934 = vst [vmem:[#allocation7 + $0x80] sm:$0xff] %v890
    %935 = vst [vmem:[#allocation7 + $0x88] sm:$0xff] %v892
    %936 = vst [vmem:[#allocation7 + $0x90] sm:$0xff] %v748
    %937 = vst [vmem:[#allocation7 + $0x98] sm:$0xff] %v750
    %938 = vst [vmem:[#allocation7 + $0xa0] sm:$0xff] %v821
    %939 = vst [vmem:[#allocation7 + $0xa8] sm:$0xff] %v823
    %940 = vst [vmem:[#allocation7 + $0xb0] sm:$0xff] %v894
    %941 = vst [vmem:[#allocation7 + $0xb8] sm:$0xff] %v896
    %942 = vst [vmem:[#allocation7 + $0xc0] sm:$0xff] %v754
    %943 = vst [vmem:[#allocation7 + $0xc8] sm:$0xff] %v756
    %944 = vst [vmem:[#allocation7 + $0xd0] sm:$0xff] %v827
    %945 = vst [vmem:[#allocation7 + $0xd8] sm:$0xff] %v829
    %946 = vst [vmem:[#allocation7 + $0xe0] sm:$0xff] %v900
    %947 = vst [vmem:[#allocation7 + $0xe8] sm:$0xff] %v902
    %948 = vst [vmem:[#allocation7 + $0xf0] sm:$0xff] %v758
    %949 = vst [vmem:[#allocation7 + $0xf8] sm:$0xff] %v760
    %950 = vst [vmem:[#allocation7 + $0x100] sm:$0xff] %v831
    %951 = vst [vmem:[#allocation7 + $0x108] sm:$0xff] %v833
    %952 = vst [vmem:[#allocation7 + $0x110] sm:$0xff] %v904
    %953 = vst [vmem:[#allocation7 + $0x118] sm:$0xff] %v906
    %954 = vst [vmem:[#allocation7 + $0x120] sm:$0xff] %v764
    %955 = vst [vmem:[#allocation7 + $0x128] sm:$0xff] %v766
    %956 = vst [vmem:[#allocation7 + $0x130] sm:$0xff] %v837
    %957 = vst [vmem:[#allocation7 + $0x138] sm:$0xff] %v839
    %958 = vst [vmem:[#allocation7 + $0x140] sm:$0xff] %v910
    %959 = vst [vmem:[#allocation7 + $0x148] sm:$0xff] %v912
    %960 = vst [vmem:[#allocation7 + $0x150] sm:$0xff] %v768
    %961 = vst [vmem:[#allocation7 + $0x158] sm:$0xff] %v770
    %962 = vst [vmem:[#allocation7 + $0x160] sm:$0xff] %v841
    %963 = vst [vmem:[#allocation7 + $0x168] sm:$0xff] %v843
    %964 = vst [vmem:[#allocation7 + $0x170] sm:$0xff] %v914
    %965 = vst [vmem:[#allocation7 + $0x178] sm:$0xff] %v916
    // Predicated region
    $region22: #{tpu_custom_call.1} parent=1 // pred_check
      _
    $region23: #{tpu_custom_call.1} parent=1 // pred_check_branch
      %967 = sbr.rel (0) target = $region25
    $region24: #{tpu_custom_call.1} parent=1 // pred_region
      %s969 = ssub.s32 6144, 6144
      %970 = vsyncadd [#allocation4], %s969
      %s971 = sshll.u32 [#allocation7], 4
      %s972 = int_to_ptr.vmem [resolvable:$true] %s971
      %977 = dma.vmem_to_hbm [thread:$0]  %s972, 6144, %s3, [#allocation4], 768, 768, 48
    $region25: #{tpu_custom_call.1} parent=1 // pred_fallthru
      _
    // Predicated region
    $region26: #{tpu_custom_call.1} parent=1 // pred_check
      _
    $region27: #{tpu_custom_call.1} parent=1 // pred_check_branch
      %979 = sbr.rel (0) target = $region29
    $region28: #{tpu_custom_call.1} parent=1 // pred_region
      %980 = dma.done [#allocation4], 6144
    $region29: #{tpu_custom_call.1} parent=1 // pred_fallthru
      _
    %981 = vsyncpa [#allocation3], 1
    %982 = vsyncpa [#allocation6], 1
    %983 = vsyncpa [#allocation4], 1

</llo_original>
